<compile_context>
chip_gen: v7x
topology: tpu7x:2x2x1
jax: 0.10.0
libtpu: 0.0.40
codegen_flags: <defaults>
</compile_context>

<pallas_src>
import functools

import jax
import jax.numpy as jnp
from jax.experimental import pallas as pl
from jax.experimental.pallas import tpu as pltpu


def _round_up(v: int, m: int) -> int:
    return ((v + m - 1) // m) * m


def _pick_m_block(M: int, want: int) -> int:
    # Second-to-last block dim must be 8-aligned (or equal the full dim).
    return min(want, _round_up(M, 8))


def _pick_n_block(N: int, want: int) -> int:
    if N < 128:
        return N                      # full-dim block (allowed, exact)
    return min(want, _round_up(N, 128))


def _pick_k_block(K: int, want: int) -> int:
    """Reduction-axis tile.  If K > want, the wrapper zero-pads K to a
    multiple of the (128-aligned) tile so every K step is exact."""
    if K <= want:
        return K                      # single exact K step, full-dim block
    return max((want // 128) * 128, 128)


def _vmem_budget_bytes() -> int:
    """~80% of this chip's physical VMEM (64 MiB v7x, 128 MiB v5e/v6e)."""
    try:
        cap = pltpu.get_tpu_info().vmem_capacity_bytes
    except Exception:                 # pragma: no cover - conservative fallback
        cap = 64 << 20
    return int(cap * 0.8)


def _linear_kernel(x_ref, w_ref, b_ref, o_ref, acc_ref):
    k = pl.program_id(2)

    @pl.when(k == 0)
    def _init():
        # Fold the bias into the accumulator init (saves a full bm x bn add
        # and keeps the epilogue to a cast + lane-dense store).
        acc_ref[...] = jnp.broadcast_to(
            b_ref[...].astype(jnp.float32), acc_ref.shape)

    # x: (bm, bk) @ w: (bk, bn) -> (bm, bn); RHS consumed natively by the MXU.
    acc_ref[...] += jnp.dot(x_ref[...], w_ref[...],
                            preferred_element_type=jnp.float32)

    @pl.when(k == pl.num_programs(2) - 1)
    def _store():
        o_ref[...] = acc_ref[...].astype(o_ref.dtype)


@functools.partial(jax.jit, static_argnames=("block_m", "block_n", "block_k"))
def pallas_linear(x, weight, bias, *, block_m=512, block_n=512, block_k=1024):
    """y = x @ weight.T + bias

    x:      (..., K)
    weight: (N, K)   (PyTorch nn.Linear layout)
    bias:   (N,)
    returns (..., N)
    """
    *lead, K = x.shape
    N, K2 = weight.shape
    assert K == K2, "in_features mismatch"
    assert bias.shape == (N,)

    x2 = x.reshape(-1, K)
    M = x2.shape[0]

    bm = _pick_m_block(M, block_m)
    bn = _pick_n_block(N, block_n)
    bk = _pick_k_block(K, block_k)

    # Keep >=2 (i, j) tiles when the problem allows it so both v7x
    # TensorCores receive parallel work.
    if pl.cdiv(M, bm) * pl.cdiv(N, bn) < 2:
        if N >= 256 and bn >= 256:
            bn = _round_up(bn // 2, 128)
        elif M >= 16 and bm >= 16:
            bm = _round_up(bm // 2, 8)

    # One-time XLA transpose to (K, N): canonical RHS layout for the MXU.
    w_t = weight.T

    # Ragged K: zero-pad (exact — zeros contribute nothing to the sum).
    k_pad = _round_up(K, bk) - K
    if k_pad:
        x2 = jnp.pad(x2, ((0, 0), (0, k_pad)))
        w_t = jnp.pad(w_t, ((0, k_pad), (0, 0)))
    Kp = K + k_pad

    b2 = bias.reshape(1, N)           # 2-D for TPU-friendly layout

    grid = (pl.cdiv(M, bm), pl.cdiv(N, bn), Kp // bk)

    # VMEM estimate with per-array itemsizes; cap derived from this chip.
    x_item = jnp.dtype(x.dtype).itemsize
    w_item = jnp.dtype(weight.dtype).itemsize
    b_item = jnp.dtype(bias.dtype).itemsize
    o_item = x_item
    vmem_need = (2 * bm * bk * x_item        # double-buffered x tiles
                 + 2 * bk * bn * w_item      # double-buffered W tiles
                 + 2 * bn * b_item           # double-buffered bias tiles
                 + 2 * bm * bn * o_item      # double-buffered out tiles
                 + bm * bn * 4)              # f32 accumulator scratch
    budget = _vmem_budget_bytes()
    vmem_limit = min(max(int(vmem_need * 1.3) + (4 << 20), 32 << 20), budget)

    out2 = pl.pallas_call(
        _linear_kernel,
        out_shape=jax.ShapeDtypeStruct((M, N), x.dtype),
        grid_spec=pltpu.PrefetchScalarGridSpec(
            num_scalar_prefetch=0,
            grid=grid,
            in_specs=[
                pl.BlockSpec((bm, bk), lambda i, j, k: (i, k)),   # x tile
                pl.BlockSpec((bk, bn), lambda i, j, k: (k, j)),   # W^T tile
                pl.BlockSpec((1, bn), lambda i, j, k: (0, j)),    # bias tile
            ],
            out_specs=pl.BlockSpec((bm, bn), lambda i, j, k: (i, j)),
            scratch_shapes=[pltpu.VMEM((bm, bn), jnp.float32)],
        ),
        compiler_params=pltpu.CompilerParams(
            dimension_semantics=("parallel", "parallel", "arbitrary"),
            vmem_limit_bytes=vmem_limit,
        ),
    )(x2, w_t, b2)

    return out2.reshape(*lead, N)


if __name__ == "__main__":
    # Small, deterministic setup consistent with nn.Linear(in_features, out_features).
    in_features = 32
    out_features = 64
    batch = 8

    key = jax.random.PRNGKey(0)
    kx, kw, kb = jax.random.split(key, 3)

    x = jax.random.normal(kx, (batch, in_features), dtype=jnp.float32)
    # Deterministic parameter init (Kaiming-uniform-ish bound like PyTorch).
    bound = 1.0 / (in_features ** 0.5)
    weight = jax.random.uniform(
        kw, (out_features, in_features), dtype=jnp.float32,
        minval=-bound, maxval=bound)
    bias = jax.random.uniform(
        kb, (out_features,), dtype=jnp.float32, minval=-bound, maxval=bound)

    y = pallas_linear(x, weight, bias)
    jax.block_until_ready(y)

    # Cross-check against plain JAX reference.
    y_ref = x @ weight.T + bias
    assert y.shape == (batch, out_features)
    assert jnp.allclose(y, y_ref, atol=1e-5, rtol=1e-5)

    print("KERNEL_OK")
</pallas_src>

<mosaic_0001>
module attributes {stable_mosaic.version = 11 : i64} {
  func.func @_linear_kernel(%arg0: i32, %arg1: i32, %arg2: i32, %arg3: memref<8x32xf32, #tpu.memory_space<vmem>>, %arg4: memref<32x64xf32, #tpu.memory_space<vmem>>, %arg5: memref<1x64xf32, #tpu.memory_space<vmem>>, %arg6: memref<8x64xf32, #tpu.memory_space<vmem>>, %arg7: memref<8x64xf32, #tpu.memory_space<vmem>>) attributes {dimension_semantics = [#tpu.dimension_semantics<parallel>, #tpu.dimension_semantics<parallel>, #tpu.dimension_semantics<arbitrary>], iteration_bounds = array<i64: 1, 1, 1>, scalar_prefetch = 0 : i64, scratch_operands = 1 : i64, tpu.core_type = #tpu.core_type<tc>, window_params = [{transform_indices = @transform_0, window_bounds = array<i64: 8, 32>}, {transform_indices = @transform_1, window_bounds = array<i64: 32, 64>}, {transform_indices = @transform_2, window_bounds = array<i64: 1, 64>}, {transform_indices = @transform_3, window_bounds = array<i64: 8, 64>}]} {
    %c0_i32 = arith.constant 0 : i32
    %0 = arith.cmpi eq, %arg2, %c0_i32 : i32
    %1 = arith.extui %0 : i1 to i32
    %c0_i32_0 = arith.constant 0 : i32
    %2 = arith.cmpi ne, %1, %c0_i32_0 : i32
    scf.if %2 {
      %c0_10 = arith.constant 0 : index
      %c0_11 = arith.constant 0 : index
      %12 = vector.load %arg5[%c0_10, %c0_11] : memref<1x64xf32, #tpu.memory_space<vmem>>, vector<1x64xf32>
      %13 = vector.shape_cast %12 : vector<1x64xf32> to vector<1x64xf32>
      %14 = vector.broadcast %13 : vector<1x64xf32> to vector<8x64xf32>
      %c0_12 = arith.constant 0 : index
      %c0_13 = arith.constant 0 : index
      %15 = vector.load %arg7[%c0_12, %c0_13] : memref<8x64xf32, #tpu.memory_space<vmem>>, vector<8x64xf32>
      tpu.vector_store %arg7[%c0_12, %c0_13], %14 {strides = array<i32>} : memref<8x64xf32, #tpu.memory_space<vmem>>, vector<8x64xf32>,
    } else {
    }
    %c0 = arith.constant 0 : index
    %c0_1 = arith.constant 0 : index
    %3 = vector.load %arg7[%c0, %c0_1] : memref<8x64xf32, #tpu.memory_space<vmem>>, vector<8x64xf32>
    %c0_2 = arith.constant 0 : index
    %c0_3 = arith.constant 0 : index
    %4 = vector.load %arg3[%c0_2, %c0_3] : memref<8x32xf32, #tpu.memory_space<vmem>>, vector<8x32xf32>
    %c0_4 = arith.constant 0 : index
    %c0_5 = arith.constant 0 : index
    %5 = vector.load %arg4[%c0_4, %c0_5] : memref<32x64xf32, #tpu.memory_space<vmem>>, vector<32x64xf32>
    %cst = arith.constant dense<0.000000e+00> : vector<8x64xf32>
    %6 = tpu.matmul %4, %5, %cst {dimension_numbers = #tpu.dot_dimension_numbers<[1], [0], [0], [1], [0, 0, 1, 1], [], []>} : vector<8x32xf32>, vector<32x64xf32>, vector<8x64xf32> -> vector<8x64xf32>
    %7 = arith.addf %3, %6 : vector<8x64xf32>
    %c0_6 = arith.constant 0 : index
    %c0_7 = arith.constant 0 : index
    %8 = vector.load %arg7[%c0_6, %c0_7] : memref<8x64xf32, #tpu.memory_space<vmem>>, vector<8x64xf32>
    tpu.vector_store %arg7[%c0_6, %c0_7], %7 {strides = array<i32>} : memref<8x64xf32, #tpu.memory_space<vmem>>, vector<8x64xf32>,
    %c0_i32_8 = arith.constant 0 : i32
    %9 = arith.cmpi eq, %arg2, %c0_i32_8 : i32
    %10 = arith.extui %9 : i1 to i32
    %c0_i32_9 = arith.constant 0 : i32
    %11 = arith.cmpi ne, %10, %c0_i32_9 : i32
    scf.if %11 {
      %c0_10 = arith.constant 0 : index
      %c0_11 = arith.constant 0 : index
      %12 = vector.load %arg7[%c0_10, %c0_11] : memref<8x64xf32, #tpu.memory_space<vmem>>, vector<8x64xf32>
      %c0_12 = arith.constant 0 : index
      %c0_13 = arith.constant 0 : index
      %13 = vector.load %arg6[%c0_12, %c0_13] : memref<8x64xf32, #tpu.memory_space<vmem>>, vector<8x64xf32>
      tpu.vector_store %arg6[%c0_12, %c0_13], %12 {strides = array<i32>} : memref<8x64xf32, #tpu.memory_space<vmem>>, vector<8x64xf32>,
    } else {
    }
    return
  }
  func.func @transform_0(%arg0: i32, %arg1: i32, %arg2: i32) -> (i32, i32) {
    %c0_i32 = arith.constant 0 : i32
    return %arg0, %arg2 : i32, i32
  }
  func.func @transform_1(%arg0: i32, %arg1: i32, %arg2: i32) -> (i32, i32) {
    %c0_i32 = arith.constant 0 : i32
    return %arg2, %arg1 : i32, i32
  }
  func.func @transform_2(%arg0: i32, %arg1: i32, %arg2: i32) -> (i32, i32) {
    %c0_i32 = arith.constant 0 : i32
    %c0_i32_0 = arith.constant 0 : i32
    return %c0_i32, %arg1 : i32, i32
  }
  func.func @transform_3(%arg0: i32, %arg1: i32, %arg2: i32) -> (i32, i32) {
    %c0_i32 = arith.constant 0 : i32
    return %arg0, %arg1 : i32, i32
  }
}

</mosaic_0001>

<llo_original>
// kernel: pallas_linear.1
$region0: #{pallas_linear.1}
  #allocation0 [shape = 'u32[]', space=smem, size = 0x4, offset = 0x4, fixed_abs, tag = 'smem constant byte address 0x4 - core index']
  #allocation1 [shape = 'u32[144,128]{1,0:T(1,128)}', space=vmem, size = 0x12000, scoped, tag = 'internal scratch']
  #allocation2 [shape = 'f32[8,64]{1,0:T(8,128)}', space=vmem, size = 0x1000, scoped, tag = 'scratch operand']
  %s0 = inlined_call_operand.hbm [shape: f32[8,32], index: 0, kind: input, shape index: {}]
  %s1 = inlined_call_operand.hbm [shape: f32[32,64], index: 1, kind: input, shape index: {}]
  %s2 = inlined_call_operand.vmem [shape: f32[1,64], index: 2, kind: input, shape index: {}]
  %s3 = inlined_call_operand.hbm [shape: f32[8,64], index: 3, kind: output, shape index: {}]
  %s4 = sld [smem:[#allocation0]]
  $region38: #{pallas_linear.1} parent=0
    _
  %s6 = ssub.s32 1, %s4
  %s7 = scalar_select 0, %s6, %s4
  $region1: #{pallas_linear.1} parent=0
    #allocation3 [shape = 'u8[4096]{0}', space=vmem, size = 0x1000, scoped, tag = 'input window, operand 0, single buffered']
    #allocation4 [shape = 's32[1]{0}', space=sflag, size = 0x4, scoped, tag = 'scoped memory for pallas_linear.1']
    #allocation5 [shape = 's32[1]{0}', space=sflag, size = 0x4, scoped, tag = 'scoped memory for pallas_linear.1']
    #allocation6 [shape = 'u8[16384]{0}', space=vmem, size = 0x4000, scoped, tag = 'input window, operand 1, single buffered']
    #allocation7 [shape = 's32[1]{0}', space=sflag, size = 0x4, scoped, tag = 'scoped memory for pallas_linear.1']
    #allocation8 [shape = 'u8[4096]{0}', space=vmem, size = 0x1000, scoped, tag = 'output window, operand 0, single buffered']
    %8 = vsyncpa [#allocation4], 0
    %9 = vsyncpa [#allocation7], 0
    %10 = vsyncpa [#allocation5], 0
    // Predicated region
    $region2: #{pallas_linear.1} parent=1 // pred_check
      _
    $region3: #{pallas_linear.1} parent=1 // pred_check_branch
      %12 = sbr.rel (0) target = $region5
    $region4: #{pallas_linear.1} parent=1 // pred_region
      %s14 = ssub.s32 128, 128
      %15 = vsyncadd [#allocation4], %s14
      %s17 = sshll.u32 [#allocation3], 4
      %s18 = int_to_ptr.vmem [resolvable:$true] %s17
      %20 = dma.hbm_to_vmem [thread:$0]  %s0, 128, %s18, [#allocation4]
    $region5: #{pallas_linear.1} parent=1 // pred_fallthru
      _
    // Predicated region
    $region6: #{pallas_linear.1} parent=1 // pred_check
      _
    $region7: #{pallas_linear.1} parent=1 // pred_check_branch
      %22 = sbr.rel (0) target = $region9
    $region8: #{pallas_linear.1} parent=1 // pred_region
      %s24 = ssub.s32 512, 512
      %25 = vsyncadd [#allocation7], %s24
      %s26 = sshll.u32 [#allocation6], 4
      %s27 = int_to_ptr.vmem [resolvable:$true] %s26
      %32 = dma.hbm_to_vmem [thread:$0]  %s1, 512, %s27, [#allocation7], 128, 128, 8
    $region9: #{pallas_linear.1} parent=1 // pred_fallthru
      _
    // Predicated region
    $region10: #{pallas_linear.1} parent=1 // pred_check
      _
    $region11: #{pallas_linear.1} parent=1 // pred_check_branch
      %34 = sbr.rel (0) target = $region13
    $region12: #{pallas_linear.1} parent=1 // pred_region
      _
    $region13: #{pallas_linear.1} parent=1 // pred_fallthru
      _
    // Predicated region
    $region14: #{pallas_linear.1} parent=1 // pred_check
      _
    $region15: #{pallas_linear.1} parent=1 // pred_check_branch
      %36 = sbr.rel (0) target = $region17
    $region16: #{pallas_linear.1} parent=1 // pred_region
      %37 = dma.done [#allocation4], 128
    $region17: #{pallas_linear.1} parent=1 // pred_fallthru
      _
    // Predicated region
    $region18: #{pallas_linear.1} parent=1 // pred_check
      _
    $region19: #{pallas_linear.1} parent=1 // pred_check_branch
      %39 = sbr.rel (0) target = $region21
    $region20: #{pallas_linear.1} parent=1 // pred_region
      %40 = dma.done [#allocation7], 512
    $region21: #{pallas_linear.1} parent=1 // pred_fallthru
      _
    %p41 = scmp.eq.s32.totalorder 0, 0
    // Predicated region
    $region22: #{pallas_linear.1} parent=1 // pred_check
      %p42 = pneg %p41
    $region23: #{pallas_linear.1} parent=1 // pred_check_branch
      %44 = sbr.rel (%p42) target = $region25
    $region24: #{pallas_linear.1} parent=1 // pred_region
      %v45 = vld [vmem:[%s2] sm:$0x1]
      %v47 = vlaneseq
      %v48 = vshrl.u32 %v47, 7
      %v49 = vsub.s32 0, %v48
      %v50 = vrot.slane %v45, %v49
      %vm52 = vcmask 523264
      %53 = vst.msk [vmem:[#allocation2] sm:$0xff] %vm52, %v50
    $region25: #{pallas_linear.1} parent=1 // pred_fallthru
      _
    %v54 = vld [vmem:[#allocation2] sm:$0xff]
    %v55 = vld [vmem:[#allocation3] sm:$0xff]
    %v56 = vld [vmem:[#allocation6] sm:$0xff]
    %v57 = vld [vmem:[#allocation6 + $0x8] sm:$0xff]
    %v58 = vld [vmem:[#allocation6 + $0x10] sm:$0xff]
    %v59 = vld [vmem:[#allocation6 + $0x18] sm:$0xff]
    %vm60 = vcmask 261120
    %v62 = vsel %vm60, %v55, 0
    %64 = vmatprep.subr.mxu0 0.0
    %65 = vmatpush1.msra.mxu0 %v56
    %66 = vmatprep.subr.mxu0 0.0
    %67 = vmatpush1.msra.mxu0 %v57
    %68 = vmatprep.subr.mxu0 0.0
    %69 = vmatpush1.msra.mxu0 %v58
    %70 = vmatprep.subr.mxu0 0.0
    %71 = vmatpush1.msra.mxu0 %v59
    %72 = vmatprep.subr.mxu0 0.0
    %73 = vmatpush1.msra.mxu0 0.0
    %74 = vmatprep.subr.mxu0 0.0
    %75 = vmatpush1.msra.mxu0 0.0
    %76 = vmatprep.subr.mxu0 0.0
    %77 = vmatpush1.msra.mxu0 0.0
    %78 = vmatprep.subr.mxu0 0.0
    %79 = vmatpush1.msra.mxu0 0.0
    %80 = vmatprep.subr.mxu0 0.0
    %81 = vmatpush1.msra.mxu0 0.0
    %82 = vmatprep.subr.mxu0 0.0
    %83 = vmatpush1.msra.mxu0 0.0
    %84 = vmatprep.subr.mxu0 0.0
    %85 = vmatpush1.msra.mxu0 0.0
    %86 = vmatprep.subr.mxu0 0.0
    %87 = vmatpush1.msra.mxu0 0.0
    %88 = vmatprep.subr.mxu0 0.0
    %89 = vmatpush1.msra.mxu0 0.0
    %90 = vmatprep.subr.mxu0 0.0
    %91 = vmatpush1.msra.mxu0 0.0
    %92 = vmatprep.subr.mxu0 0.0
    %93 = vmatpush1.msra.mxu0 0.0
    %94 = vmatprep.subr.mxu0 0.0
    %95 = vmatpush1.msra.mxu0 0.0
    %96 = vmatprep.subr.mxu0 0.0
    %97 = vmatpush1.msra.mxu0 0.0
    %98 = vmatprep.subr.mxu0 0.0
    %99 = vmatpush1.msra.mxu0 0.0
    %100 = vmatprep.subr.mxu0 0.0
    %101 = vmatpush1.msra.mxu0 0.0
    %102 = vmatprep.subr.mxu0 0.0
    %103 = vmatpush1.msra.mxu0 0.0
    %104 = vmatprep.subr.mxu0 0.0
    %105 = vmatpush1.msra.mxu0 0.0
    %106 = vmatprep.subr.mxu0 0.0
    %107 = vmatpush1.msra.mxu0 0.0
    %108 = vmatprep.subr.mxu0 0.0
    %109 = vmatpush1.msra.mxu0 0.0
    %110 = vmatprep.subr.mxu0 0.0
    %111 = vmatpush1.msra.mxu0 0.0
    %112 = vmatprep.subr.mxu0 0.0
    %113 = vmatpush1.msra.mxu0 0.0
    %114 = vmatprep.subr.mxu0 0.0
    %115 = vmatpush1.msra.mxu0 0.0
    %116 = vmatprep.subr.mxu0 0.0
    %117 = vmatpush1.msra.mxu0 0.0
    %118 = vmatprep.subr.mxu0 0.0
    %119 = vmatpush1.msra.mxu0 0.0
    %120 = vmatprep.subr.mxu0 0.0
    %121 = vmatpush1.msra.mxu0 0.0
    %122 = vmatprep.subr.mxu0 0.0
    %123 = vmatpush1.msra.mxu0 0.0
    %124 = vmatprep.subr.mxu0 0.0
    %125 = vmatpush1.msra.mxu0 0.0
    %126 = vmatprep.subr.mxu0 0.0
    %127 = vmatpush1.msra.mxu0 0.0
    %128 = vmatprep.mubr.f32.mxu0 0.0
    %129 = vmatmul.mubr.f32.gmra.mrb[0].mxu0 %v62
    %v130 = vpop.f32.mrb[0].mxu0
    %v131 = vadd.f32 0.0, %v130
    %v132 = vpop.f32.mrb[0].mxu0
    %133 = vdwg.mxu0
    %v134 = vadd.f32 %v54, %v131
    %vm135 = vcmask 523264
    %136 = vst.msk [vmem:[#allocation2] sm:$0xff] %vm135, %v134
    // Predicated region
    $region26: #{pallas_linear.1} parent=1 // pred_check
      %p137 = pneg %p41
    $region27: #{pallas_linear.1} parent=1 // pred_check_branch
      %139 = sbr.rel (%p137) target = $region29
    $region28: #{pallas_linear.1} parent=1 // pred_region
      %v140 = vld [vmem:[#allocation2] sm:$0xff]
      %141 = vst.msk [vmem:[#allocation8] sm:$0xff] %vm135, %v140
    $region29: #{pallas_linear.1} parent=1 // pred_fallthru
      _
    // Predicated region
    $region30: #{pallas_linear.1} parent=1 // pred_check
      _
    $region31: #{pallas_linear.1} parent=1 // pred_check_branch
      %143 = sbr.rel (0) target = $region33
    $region32: #{pallas_linear.1} parent=1 // pred_region
      %s145 = ssub.s32 128, 128
      %146 = vsyncadd [#allocation5], %s145
      %s148 = sshll.u32 [#allocation8], 4
      %s149 = int_to_ptr.vmem [resolvable:$true] %s148
      %151 = dma.vmem_to_hbm [thread:$0]  %s149, 128, %s3, [#allocation5]
    $region33: #{pallas_linear.1} parent=1 // pred_fallthru
      _
    // Predicated region
    $region34: #{pallas_linear.1} parent=1 // pred_check
      _
    $region35: #{pallas_linear.1} parent=1 // pred_check_branch
      %153 = sbr.rel (0) target = $region37
    $region36: #{pallas_linear.1} parent=1 // pred_region
      %154 = dma.done [#allocation5], 128
    $region37: #{pallas_linear.1} parent=1 // pred_fallthru
      _
    %155 = vsyncpa [#allocation4], 1
    %156 = vsyncpa [#allocation7], 1
    %157 = vsyncpa [#allocation5], 1

</llo_original>
